<compile_context>
chip_gen: v6e
topology: v6e:2x2x1
jax: 0.10.0
libtpu: 0.0.40
codegen_flags: <defaults>
</compile_context>

<pallas_src>
import functools

import numpy as np
import jax
import jax.numpy as jnp
from jax import lax
from jax.experimental import pallas as pl
from jax.experimental.pallas import tpu as pltpu

HALF_PI = float(np.pi / 2.0)


def _zrelu_kernel(x_ref, o_ref, *, polar):
    """x_ref holds a (tr, cols) tile of the flattened activations.

    The (real, imag) pair of every complex value occupies two adjacent lanes
    (real at even lane index, imag at odd lane index); cols is even, so a
    pair never straddles a row.
    """
    x = x_ref[...]
    axis = x.ndim - 1
    n = x.shape[axis]                       # even by construction

    lane = lax.broadcasted_iota(jnp.int32, x.shape, axis)
    is_real = (lane & 1) == 0               # even lanes hold the real part

    # pltpu.roll follows jnp.roll semantics (out[j] = in[(j - shift) % n]),
    # so shift = n - 1 fetches lane j+1 (the imag partner of a real lane).
    # Rotates run on the XLU (separate bundle slot from the VPU); the
    # wrapped-around lanes are never selected because n is even.
    x_next = pltpu.roll(x, shift=n - 1, axis=axis)

    if polar:
        # polar=True: the imag lane already holds the phase.
        phase = jnp.where(is_real, x_next, x)
        keep = (phase >= 0.0) & (phase <= HALF_PI)
    else:
        # 0 <= atan2(im, re) <= pi/2  <=>  re >= 0 and im >= 0.
        # (Signed-zero nit: atan2(+0, -0) = pi is rejected by the exact
        # reference while -0.0 >= 0 accepts it -- negligible in practice.)
        x_prev = pltpu.roll(x, shift=1, axis=axis)     # lane j-1
        partner = jnp.where(is_real, x_next, x_prev)
        keep = (x >= 0.0) & (partner >= 0.0)

    o_ref[...] = jnp.where(keep, x, jnp.zeros_like(x))


def _choose_cols(total):
    """Pick the flattened slab's last (lane) dimension.

    Largest divisor of `total` that is <= 2048, preferring multiples of 256
    (lane-dense, pair-aligned), then 128, then any even divisor; also prefer
    leaving at least 8 rows.  Always even (total is even: trailing dim is 2).
    """
    for min_rows in (8, 1):
        for step in (256, 128, 2):
            c = 2048
            while c >= step:
                if total % c == 0 and total // c >= min_rows:
                    return c
                c -= step
    return 2  # unreachable: total is always even


def zrelu(x, polar=False):
    """ZReLU on an array whose last dimension holds (real, imag)."""
    shape = x.shape
    assert shape[-1] == 2, "last dimension must hold (real, imag)"
    dtype = x.dtype
    itemsize = jnp.dtype(dtype).itemsize
    total = int(np.prod(shape))

    # Free reshape to a single lane-dense 2D slab; the re/im interleave is
    # preserved and pairs never straddle a row because cols is even.
    cols = _choose_cols(total)
    assert cols % 2 == 0
    rows = total // cols
    x2 = x.reshape(rows, cols)

    # Byte-targeted row tile: ~2 MiB per block (near the measured HBM-roofline
    # knee).  1 input + 1 output, double buffered -> ~8 MiB resident, safely
    # inside the scoped-VMEM budget of every generation (incl. v7x's 64 MiB
    # physical / 32 MiB default scoped).
    sub = 8 * max(1, 4 // itemsize)                      # sublane multiple
    target_rows = max(sub, (2 << 20) // (cols * itemsize))
    tr = max(sub, (target_rows // sub) * sub)
    tr = min(tr, rows)
    if tr == rows and rows >= 2 * sub:
        # Split into >=2 grid steps so the "parallel" axis can shard across
        # both v7x TensorCores and the pipeline has something to overlap.
        tr = max(sub, ((rows + 1) // 2) // sub * sub)

    grid = (pl.cdiv(rows, tr),)        # partial last block handled by Pallas
    blk = pl.BlockSpec((tr, cols), lambda i: (i, 0))

    out = pl.pallas_call(
        functools.partial(_zrelu_kernel, polar=bool(polar)),
        grid=grid,
        in_specs=[blk],
        out_specs=blk,
        out_shape=jax.ShapeDtypeStruct((rows, cols), dtype),
        compiler_params=pltpu.CompilerParams(
            dimension_semantics=("parallel",),
            vmem_limit_bytes=32 * 1024 * 1024,
        ),
    )(x2)

    return out.reshape(shape)


def zrelu_reference(x, polar=False):
    re = x[..., 0]
    im = x[..., 1]
    phase = im if polar else jnp.arctan2(im, re)
    keep = (phase >= 0.0) & (phase <= HALF_PI)
    return jnp.where(keep[..., None], x, 0.0).astype(x.dtype)


if __name__ == "__main__":
    key = jax.random.PRNGKey(0)
    k1, k2, k3 = jax.random.split(key, 3)

    # NCHW conv activations with trailing complex dim: [N, C, H, W, 2]
    x1 = jax.random.normal(k1, (2, 4, 16, 16, 2), dtype=jnp.float32)
    # Larger shape -> multi-step grid (megacore / pipelining path).
    x2 = jax.random.normal(k2, (4, 8, 32, 16, 2), dtype=jnp.float32)
    # Row count not divisible by the row tile -> exercises the partial block.
    x3 = jax.random.normal(k3, (5, 8, 32, 16, 2), dtype=jnp.float32)

    for xt, polar in ((x1, False), (x1, True), (x2, False), (x3, False)):
        out = jax.block_until_ready(zrelu(xt, polar=polar))
        ref = zrelu_reference(xt, polar=polar)
        np.testing.assert_array_equal(np.asarray(out), np.asarray(ref))

    print("KERNEL_OK")
</pallas_src>

<mosaic_0001>
module attributes {stable_mosaic.version = 11 : i64} {
  func.func @_zrelu_kernel(%arg0: i32, %arg1: memref<8x512xf32, #tpu.memory_space<vmem>>, %arg2: memref<8x512xf32, #tpu.memory_space<vmem>>) attributes {dimension_semantics = [#tpu.dimension_semantics<parallel>], iteration_bounds = array<i64: 1>, scalar_prefetch = 0 : i64, scratch_operands = 0 : i64, tpu.core_type = #tpu.core_type<tc>, window_params = [{transform_indices = @transform_0, window_bounds = array<i64: 8, 512>}, {transform_indices = @transform_1, window_bounds = array<i64: 8, 512>}]} {
    %c0 = arith.constant 0 : index
    %c0_0 = arith.constant 0 : index
    %0 = vector.load %arg1[%c0, %c0_0] : memref<8x512xf32, #tpu.memory_space<vmem>>, vector<8x512xf32>
    %1 = tpu.iota {dimensions = array<i32: 1>} : vector<8x512xi32>
    %c1_i32 = arith.constant 1 : i32
    %2 = vector.broadcast %c1_i32 : i32 to vector<8x512xi32>
    %3 = arith.andi %1, %2 : vector<8x512xi32>
    %c0_i32 = arith.constant 0 : i32
    %4 = vector.broadcast %c0_i32 : i32 to vector<8x512xi32>
    %5 = arith.cmpi eq, %3, %4 : vector<8x512xi32>
    %c511_i32 = arith.constant 511 : i32
    %6 = tpu.dynamic_rotate %0 by %c511_i32 dim 1 : vector<8x512xf32>, i32 -> vector<8x512xf32>
    %c1_i32_1 = arith.constant 1 : i32
    %7 = tpu.dynamic_rotate %0 by %c1_i32_1 dim 1 : vector<8x512xf32>, i32 -> vector<8x512xf32>
    %8 = arith.select %5, %6, %7 : vector<8x512xi1>, vector<8x512xf32>
    %cst = arith.constant 0.000000e+00 : f32
    %9 = vector.broadcast %cst : f32 to vector<8x512xf32>
    %10 = arith.cmpf oge, %0, %9 : vector<8x512xf32>
    %cst_2 = arith.constant 0.000000e+00 : f32
    %11 = vector.broadcast %cst_2 : f32 to vector<8x512xf32>
    %12 = arith.cmpf oge, %8, %11 : vector<8x512xf32>
    %13 = arith.andi %10, %12 : vector<8x512xi1>
    %cst_3 = arith.constant 0.000000e+00 : f32
    %14 = vector.broadcast %cst_3 : f32 to vector<8x512xf32>
    %15 = arith.select %13, %0, %14 : vector<8x512xi1>, vector<8x512xf32>
    %c0_4 = arith.constant 0 : index
    %c0_5 = arith.constant 0 : index
    %16 = vector.load %arg2[%c0_4, %c0_5] : memref<8x512xf32, #tpu.memory_space<vmem>>, vector<8x512xf32>
    tpu.vector_store %arg2[%c0_4, %c0_5], %15 {strides = array<i32>} : memref<8x512xf32, #tpu.memory_space<vmem>>, vector<8x512xf32>,
    return
  }
  func.func @transform_0(%arg0: i32) -> (i32, i32) {
    %c0_i32 = arith.constant 0 : i32
    %c0_i32_0 = arith.constant 0 : i32
    return %arg0, %c0_i32 : i32, i32
  }
  func.func @transform_1(%arg0: i32) -> (i32, i32) {
    %c0_i32 = arith.constant 0 : i32
    %c0_i32_0 = arith.constant 0 : i32
    return %arg0, %c0_i32 : i32, i32
  }
}

</mosaic_0001>

<llo_original>
// kernel: tpu_custom_call.1
$region0: #{tpu_custom_call.1}
  #allocation0 [shape = 'u32[]', space=smem, size = 0x4, offset = 0x4, fixed_abs, tag = 'smem constant byte address 0x4 - core index']
  #allocation1 [shape = 'u32[144,128]{1,0:T(1,128)}', space=vmem, size = 0x12000, scoped, tag = 'internal scratch']
  %s0 = inlined_call_operand.hbm [shape: f32[8,512], index: 0, kind: input, shape index: {}]
  %s1 = inlined_call_operand.hbm [shape: f32[8,512], index: 1, kind: output, shape index: {}]
  %s2 = sld [smem:[#allocation0]]
  $region18: #{tpu_custom_call.1} parent=0
    _
  %s4 = ssub.s32 1, %s2
  %s5 = scalar_select 0, %s4, %s2
  $region1: #{tpu_custom_call.1} parent=0
    #allocation2 [shape = 'u8[16384]{0}', space=vmem, size = 0x4000, scoped, tag = 'input window, operand 0, single buffered']
    #allocation3 [shape = 's32[1]{0}', space=sflag, size = 0x4, scoped, tag = 'scoped memory for tpu_custom_call.1']
    #allocation4 [shape = 's32[1]{0}', space=sflag, size = 0x4, scoped, tag = 'scoped memory for tpu_custom_call.1']
    #allocation5 [shape = 'u8[16384]{0}', space=vmem, size = 0x4000, scoped, tag = 'output window, operand 0, single buffered']
    %6 = vsyncpa [#allocation3], 0
    %7 = vsyncpa [#allocation4], 0
    // Predicated region
    $region2: #{tpu_custom_call.1} parent=1 // pred_check
      _
    $region3: #{tpu_custom_call.1} parent=1 // pred_check_branch
      %9 = sbr.rel (0) target = $region5
    $region4: #{tpu_custom_call.1} parent=1 // pred_region
      %s11 = ssub.s32 512, 512
      %12 = vsyncadd [#allocation3], %s11
      %s14 = sshll.u32 [#allocation2], 4
      %s15 = int_to_ptr.vmem [resolvable:$true] %s14
      %17 = dma.hbm_to_vmem [thread:$0]  %s0, 512, %s15, [#allocation3]
    $region5: #{tpu_custom_call.1} parent=1 // pred_fallthru
      _
    // Predicated region
    $region6: #{tpu_custom_call.1} parent=1 // pred_check
      _
    $region7: #{tpu_custom_call.1} parent=1 // pred_check_branch
      %19 = sbr.rel (0) target = $region9
    $region8: #{tpu_custom_call.1} parent=1 // pred_region
      %20 = dma.done [#allocation3], 512
    $region9: #{tpu_custom_call.1} parent=1 // pred_fallthru
      _
    %v21 = vld [vmem:[#allocation2] sm:$0xff]
    %v22 = vld [vmem:[#allocation2 + $0x8] sm:$0xff]
    %v23 = vld [vmem:[#allocation2 + $0x10] sm:$0xff]
    %v24 = vld [vmem:[#allocation2 + $0x18] sm:$0xff]
    %v25 = vlaneseq
    %v26 = vand.u32 %v25, 127
    %v27 = vadd.s32 %v26, 128
    %v28 = vadd.s32 %v26, 256
    %v29 = vadd.s32 %v26, 384
    %v30 = vand.u32 %v26, 1
    %v31 = vand.u32 %v27, 1
    %v32 = vand.u32 %v28, 1
    %v33 = vand.u32 %v29, 1
    %vm34 = vcmp.eq.s32.totalorder %v30, 0
    %vm35 = vcmp.eq.s32.totalorder %v31, 0
    %vm36 = vcmp.eq.s32.totalorder %v32, 0
    %vm37 = vcmp.eq.s32.totalorder %v33, 0
    %38 = vrot.lane.b32.xlu0 %v21, 127
    %v39 = vpop.permute.xlu0 %38
    %40 = vrot.lane.b32.xlu0 %v22, 127
    %v41 = vpop.permute.xlu0 %40
    %42 = vrot.lane.b32.xlu0 %v23, 127
    %v43 = vpop.permute.xlu0 %42
    %44 = vrot.lane.b32.xlu0 %v24, 127
    %v45 = vpop.permute.xlu0 %44
    %vm46 = vcmp.lt.s32.totalorder %v26, 127
    %v47 = vsel %vm46, %v43, %v45
    %v48 = vsel %vm46, %v41, %v43
    %v49 = vsel %vm46, %v39, %v41
    %v50 = vsel %vm46, %v45, %v39
    %51 = vrot.lane.b32.xlu0 %v21, 1
    %v52 = vpop.permute.xlu0 %51
    %53 = vrot.lane.b32.xlu0 %v22, 1
    %v54 = vpop.permute.xlu0 %53
    %55 = vrot.lane.b32.xlu0 %v23, 1
    %v56 = vpop.permute.xlu0 %55
    %57 = vrot.lane.b32.xlu0 %v24, 1
    %v58 = vpop.permute.xlu0 %57
    %vm59 = vcmp.lt.s32.totalorder %v26, 1
    %v60 = vsel %vm59, %v56, %v58
    %v61 = vsel %vm59, %v54, %v56
    %v62 = vsel %vm59, %v52, %v54
    %v63 = vsel %vm59, %v58, %v52
    %v64 = vsel %vm34, %v49, %v63
    %v65 = vsel %vm35, %v48, %v62
    %v66 = vsel %vm36, %v47, %v61
    %v67 = vsel %vm37, %v50, %v60
    %vm68 = vcmp.ge.f32.partialorder %v21, 0.0
    %vm69 = vcmp.ge.f32.partialorder %v22, 0.0
    %vm70 = vcmp.ge.f32.partialorder %v23, 0.0
    %vm71 = vcmp.ge.f32.partialorder %v24, 0.0
    %vm72 = vcmp.ge.f32.partialorder %v64, 0.0
    %vm73 = vcmp.ge.f32.partialorder %v65, 0.0
    %vm74 = vcmp.ge.f32.partialorder %v66, 0.0
    %vm75 = vcmp.ge.f32.partialorder %v67, 0.0
    %vm76 = vmand %vm68, %vm72
    %vm77 = vmand %vm69, %vm73
    %vm78 = vmand %vm70, %vm74
    %vm79 = vmand %vm71, %vm75
    %v80 = vsel %vm76, %v21, 0.0
    %v81 = vsel %vm77, %v22, 0.0
    %v82 = vsel %vm78, %v23, 0.0
    %v83 = vsel %vm79, %v24, 0.0
    %84 = vst [vmem:[#allocation5] sm:$0xff] %v80
    %85 = vst [vmem:[#allocation5 + $0x8] sm:$0xff] %v81
    %86 = vst [vmem:[#allocation5 + $0x10] sm:$0xff] %v82
    %87 = vst [vmem:[#allocation5 + $0x18] sm:$0xff] %v83
    // Predicated region
    $region10: #{tpu_custom_call.1} parent=1 // pred_check
      _
    $region11: #{tpu_custom_call.1} parent=1 // pred_check_branch
      %89 = sbr.rel (0) target = $region13
    $region12: #{tpu_custom_call.1} parent=1 // pred_region
      %s91 = ssub.s32 512, 512
      %92 = vsyncadd [#allocation4], %s91
      %s94 = sshll.u32 [#allocation5], 4
      %s95 = int_to_ptr.vmem [resolvable:$true] %s94
      %97 = dma.vmem_to_hbm [thread:$0]  %s95, 512, %s1, [#allocation4]
    $region13: #{tpu_custom_call.1} parent=1 // pred_fallthru
      _
    // Predicated region
    $region14: #{tpu_custom_call.1} parent=1 // pred_check
      _
    $region15: #{tpu_custom_call.1} parent=1 // pred_check_branch
      %99 = sbr.rel (0) target = $region17
    $region16: #{tpu_custom_call.1} parent=1 // pred_region
      %100 = dma.done [#allocation4], 512
    $region17: #{tpu_custom_call.1} parent=1 // pred_fallthru
      _
    %101 = vsyncpa [#allocation3], 1
    %102 = vsyncpa [#allocation4], 1

</llo_original>
